<compile_context>
chip_gen: v6e
topology: v6e:2x2x1
jax: 0.10.0
libtpu: 0.0.40
codegen_flags: <defaults>
</compile_context>

<pallas_src>
import math

import jax
import jax.numpy as jnp
from jax.experimental import pallas as pl
from jax.experimental.pallas import tpu as pltpu


def _time_embedding_kernel(t_ref, tbl_ref, w1_ref, w2_ref, o_ref):
    # tbl rows: 0 = freq, 1 = phase, 2 = b1, 3 = b2 (rows 4..7 are zero pad).
    freq = tbl_ref[0:1, :]
    phase = tbl_ref[1:2, :]
    b1 = tbl_ref[2:3, :]
    b2 = tbl_ref[3:4, :]

    # (TB, 1) * (1, dim_p) + (1, dim_p) -> (TB, dim_p); single sin per element
    # (cos folded in as sin(x + pi/2) via the phase row).
    emb = jnp.sin(t_ref[...] * freq + phase)

    # bf16 operands, f32 accumulation on the MXU; bias/relu stay in f32.
    h = jnp.dot(emb.astype(jnp.bfloat16), w1_ref[...],
                preferred_element_type=jnp.float32) + b1
    h = jnp.maximum(h, 0.0)
    out = jnp.dot(h.astype(jnp.bfloat16), w2_ref[...],
                  preferred_element_type=jnp.float32) + b2
    o_ref[...] = out.astype(o_ref.dtype)


def _round_up(x: int, m: int) -> int:
    return ((x + m - 1) // m) * m


def _pick_row_block(B: int) -> int:
    """Row-block size. Never a single giant block for non-trivial B so the
    'parallel' grid axis has >= 2 steps (v7x 2nd TensorCore + DMA overlap);
    capped at 256 so large B gets >= 4-8 pipelined steps."""
    if B <= 8:
        return B  # tiny batch: grid=(1,) is unavoidable and fine
    tb = _round_up(-(-B // 2), 8)     # round_up(cdiv(B, 2), 8)
    return min(tb, 256)


def time_embedding(t: jax.Array, w1: jax.Array, b1: jax.Array,
                   w2: jax.Array, b2: jax.Array,
                   out_dtype=jnp.float32) -> jax.Array:
    """t: (B,) int/float timesteps; w1, w2: (dim, dim) torch layout (out, in);
    b1, b2: (dim,). Returns (B, dim) = Linear(ReLU(Linear(sin_pos_emb(t)))).

    Call this under jax.jit with the weights as ordinary (hoistable) params so
    the transposes / casts / table construction below fold or run once.
    Set out_dtype=jnp.bfloat16 if the consumer accepts it (halves writeback).
    """
    dim = int(w1.shape[0])
    assert dim % 2 == 0 and dim >= 4, "dim must be even and >= 4"
    B = int(t.shape[0])
    half = dim // 2
    dim_p = _round_up(dim, 128)  # lane-dense output / full-lane MXU tiles

    # ---- precomputed (hoisted) frequency + phase + bias table, zero-padded ----
    scale = math.log(10000.0) / (half - 1)
    freqs_half = jnp.exp(jnp.arange(half, dtype=jnp.float32) * -scale)
    freq_row = jnp.zeros((dim_p,), jnp.float32)
    freq_row = freq_row.at[:half].set(freqs_half).at[half:dim].set(freqs_half)
    phase_row = jnp.zeros((dim_p,), jnp.float32).at[half:dim].set(0.5 * math.pi)
    b1_row = jnp.zeros((dim_p,), jnp.float32).at[:dim].set(b1.astype(jnp.float32))
    b2_row = jnp.zeros((dim_p,), jnp.float32).at[:dim].set(b2.astype(jnp.float32))
    tbl = jnp.zeros((8, dim_p), jnp.float32)
    tbl = tbl.at[0].set(freq_row).at[1].set(phase_row)
    tbl = tbl.at[2].set(b1_row).at[3].set(b2_row)

    # ---- weights: transpose to (in, out), zero-pad, cast to bf16 ----
    w1t = jnp.zeros((dim_p, dim_p), jnp.float32)
    w1t = w1t.at[:dim, :dim].set(w1.T.astype(jnp.float32)).astype(jnp.bfloat16)
    w2t = jnp.zeros((dim_p, dim_p), jnp.float32)
    w2t = w2t.at[:dim, :dim].set(w2.T.astype(jnp.float32)).astype(jnp.bfloat16)

    t2 = t.reshape(B, 1).astype(jnp.float32)

    TB = _pick_row_block(B)
    grid = (pl.cdiv(B, TB),)

    # ---- VMEM budget: blocks + resident weights/table + in-kernel temps ----
    out_bytes = jnp.dtype(out_dtype).itemsize
    est = (2 * TB * 128 * 4                 # (TB,1) t blocks (lane-padded), 2 bufs
           + 2 * TB * dim_p * out_bytes     # output blocks, 2 bufs
           + 2 * 2 * dim_p * dim_p * 2      # two bf16 weight tiles, 2 bufs each
           + 2 * 8 * dim_p * 4              # fused side table, 2 bufs
           + 5 * TB * dim_p * 4)            # emb/h/out f32 + bf16 copies
    vmem_cap = 32 << 20                     # safe on v7x (64 MiB physical)
    try:
        vmem_cap = min(vmem_cap,
                       int(pltpu.get_tpu_info().vmem_capacity_bytes) // 2)
    except Exception:
        pass
    vmem_limit = int(min(max(2 * est, 16 << 20), vmem_cap))

    cost = pl.CostEstimate(
        flops=4 * B * dim_p * dim_p + 3 * B * dim_p,  # two matmuls + emb/relu
        transcendentals=B * dim_p,                    # one sin per element
        bytes_accessed=(4 * B + 2 * 2 * dim_p * dim_p + 4 * 8 * dim_p
                        + out_bytes * B * dim_p),
    )

    out_p = pl.pallas_call(
        _time_embedding_kernel,
        out_shape=jax.ShapeDtypeStruct((B, dim_p), out_dtype),
        grid=grid,
        in_specs=[
            pl.BlockSpec((TB, 1), lambda i: (i, 0)),       # t column
            pl.BlockSpec((8, dim_p), lambda i: (0, 0)),    # freq/phase/b1/b2 table
            pl.BlockSpec((dim_p, dim_p), lambda i: (0, 0)),  # W1^T (bf16, resident)
            pl.BlockSpec((dim_p, dim_p), lambda i: (0, 0)),  # W2^T (bf16, resident)
        ],
        out_specs=pl.BlockSpec((TB, dim_p), lambda i: (i, 0)),
        compiler_params=pltpu.CompilerParams(
            dimension_semantics=("parallel",),
            vmem_limit_bytes=vmem_limit,
        ),
        cost_estimate=cost,
    )(t2, tbl, w1t, w2t)

    if dim_p == dim:
        return out_p
    return out_p[:, :dim]


def _reference(t, w1, b1, w2, b2):
    dim = w1.shape[0]
    half = dim // 2
    e = math.log(10000.0) / (half - 1)
    e = jnp.exp(jnp.arange(half, dtype=jnp.float32) * -e)
    e = t.astype(jnp.float32)[:, None] * e[None, :]
    emb = jnp.concatenate([jnp.sin(e), jnp.cos(e)], axis=1)
    h = jnp.maximum(emb @ w1.T + b1, 0.0)
    return h @ w2.T + b2


if __name__ == "__main__":
    key = jax.random.PRNGKey(0)
    B, dim = 8, 32
    k_t, k_w1, k_b1, k_w2, k_b2 = jax.random.split(key, 5)

    # integer diffusion timesteps + torch-style Linear params
    t = jax.random.randint(k_t, (B,), minval=0, maxval=1000, dtype=jnp.int32)
    s = 1.0 / math.sqrt(dim)
    w1 = jax.random.uniform(k_w1, (dim, dim), jnp.float32, -s, s)
    b1 = jax.random.uniform(k_b1, (dim,), jnp.float32, -s, s)
    w2 = jax.random.uniform(k_w2, (dim, dim), jnp.float32, -s, s)
    b2 = jax.random.uniform(k_b2, (dim,), jnp.float32, -s, s)

    # jit so the wrapper-side transposes / casts / table construction are
    # compiled (and constant-folded when weights are hoisted by the caller).
    te = jax.jit(time_embedding)
    out = te(t, w1, b1, w2, b2)
    out = jax.block_until_ready(out)

    ref = _reference(t, w1, b1, w2, b2)
    assert out.shape == (B, dim), out.shape
    # bf16 operands on the MXU (f32 accumulation) + the sin(x + pi/2) cos fold
    # give ~1e-2-level absolute error for O(1) outputs -> compare at 2e-2.
    err = float(jnp.max(jnp.abs(out - ref)))
    assert jnp.allclose(out, ref, atol=2e-2, rtol=2e-2), f"mismatch, max err {err}"

    print("KERNEL_OK")
</pallas_src>

<mosaic_0001>
module attributes {stable_mosaic.version = 11 : i64} {
  func.func @_time_embedding_kernel(%arg0: i32, %arg1: memref<8x1xf32, #tpu.memory_space<vmem>>, %arg2: memref<8x128xf32, #tpu.memory_space<vmem>>, %arg3: memref<128x128xbf16, #tpu.memory_space<vmem>>, %arg4: memref<128x128xbf16, #tpu.memory_space<vmem>>, %arg5: memref<8x128xf32, #tpu.memory_space<vmem>>) attributes {dimension_semantics = [#tpu.dimension_semantics<parallel>], iteration_bounds = array<i64: 1>, scalar_prefetch = 0 : i64, scratch_operands = 0 : i64, tpu.core_type = #tpu.core_type<tc>, window_params = [{transform_indices = @transform_0, window_bounds = array<i64: 8, 1>}, {pipeline_mode = #tpu.pipeline_mode<synchronous>, transform_indices = @transform_1, window_bounds = array<i64: 8, 128>}, {pipeline_mode = #tpu.pipeline_mode<synchronous>, transform_indices = @transform_2, window_bounds = array<i64: 128, 128>}, {pipeline_mode = #tpu.pipeline_mode<synchronous>, transform_indices = @transform_3, window_bounds = array<i64: 128, 128>}, {transform_indices = @transform_4, window_bounds = array<i64: 8, 128>}]} {
    %c0 = arith.constant 0 : index
    %c0_0 = arith.constant 0 : index
    %0 = vector.load %arg2[%c0, %c0_0] : memref<8x128xf32, #tpu.memory_space<vmem>>, vector<1x128xf32>
    %c1 = arith.constant 1 : index
    %c0_1 = arith.constant 0 : index
    %1 = vector.load %arg2[%c1, %c0_1] : memref<8x128xf32, #tpu.memory_space<vmem>>, vector<1x128xf32>
    %c2 = arith.constant 2 : index
    %c0_2 = arith.constant 0 : index
    %2 = vector.load %arg2[%c2, %c0_2] : memref<8x128xf32, #tpu.memory_space<vmem>>, vector<1x128xf32>
    %c3 = arith.constant 3 : index
    %c0_3 = arith.constant 0 : index
    %3 = vector.load %arg2[%c3, %c0_3] : memref<8x128xf32, #tpu.memory_space<vmem>>, vector<1x128xf32>
    %c0_4 = arith.constant 0 : index
    %c0_5 = arith.constant 0 : index
    %4 = vector.load %arg1[%c0_4, %c0_5] : memref<8x1xf32, #tpu.memory_space<vmem>>, vector<8x1xf32>
    %5 = vector.broadcast %4 : vector<8x1xf32> to vector<8x128xf32>
    %6 = vector.broadcast %0 : vector<1x128xf32> to vector<8x128xf32>
    %7 = arith.mulf %5, %6 : vector<8x128xf32>
    %8 = vector.broadcast %1 : vector<1x128xf32> to vector<8x128xf32>
    %9 = arith.addf %7, %8 : vector<8x128xf32>
    %10 = math.sin %9 : vector<8x128xf32>
    %11 = arith.truncf %10 : vector<8x128xf32> to vector<8x128xbf16>
    %c0_6 = arith.constant 0 : index
    %c0_7 = arith.constant 0 : index
    %12 = vector.load %arg3[%c0_6, %c0_7] : memref<128x128xbf16, #tpu.memory_space<vmem>>, vector<128x128xbf16>
    %cst = arith.constant dense<0.000000e+00> : vector<8x128xf32>
    %13 = tpu.matmul %11, %12, %cst {dimension_numbers = #tpu.dot_dimension_numbers<[1], [0], [0], [1], [0, 0, 1, 1], [], []>} : vector<8x128xbf16>, vector<128x128xbf16>, vector<8x128xf32> -> vector<8x128xf32>
    %14 = vector.broadcast %2 : vector<1x128xf32> to vector<8x128xf32>
    %15 = arith.addf %13, %14 : vector<8x128xf32>
    %cst_8 = arith.constant 0.000000e+00 : f32
    %16 = vector.broadcast %cst_8 : f32 to vector<8x128xf32>
    %17 = arith.maximumf %15, %16 : vector<8x128xf32>
    %18 = arith.truncf %17 : vector<8x128xf32> to vector<8x128xbf16>
    %c0_9 = arith.constant 0 : index
    %c0_10 = arith.constant 0 : index
    %19 = vector.load %arg4[%c0_9, %c0_10] : memref<128x128xbf16, #tpu.memory_space<vmem>>, vector<128x128xbf16>
    %cst_11 = arith.constant dense<0.000000e+00> : vector<8x128xf32>
    %20 = tpu.matmul %18, %19, %cst_11 {dimension_numbers = #tpu.dot_dimension_numbers<[1], [0], [0], [1], [0, 0, 1, 1], [], []>} : vector<8x128xbf16>, vector<128x128xbf16>, vector<8x128xf32> -> vector<8x128xf32>
    %21 = vector.broadcast %3 : vector<1x128xf32> to vector<8x128xf32>
    %22 = arith.addf %20, %21 : vector<8x128xf32>
    %c0_12 = arith.constant 0 : index
    %c0_13 = arith.constant 0 : index
    %23 = vector.load %arg5[%c0_12, %c0_13] : memref<8x128xf32, #tpu.memory_space<vmem>>, vector<8x128xf32>
    tpu.vector_store %arg5[%c0_12, %c0_13], %22 {strides = array<i32>} : memref<8x128xf32, #tpu.memory_space<vmem>>, vector<8x128xf32>,
    return
  }
  func.func @transform_0(%arg0: i32) -> (i32, i32) {
    %c0_i32 = arith.constant 0 : i32
    %c0_i32_0 = arith.constant 0 : i32
    return %arg0, %c0_i32 : i32, i32
  }
  func.func @transform_1(%arg0: i32) -> (i32, i32) {
    %c0_i32 = arith.constant 0 : i32
    %c0_i32_0 = arith.constant 0 : i32
    %c0_i32_1 = arith.constant 0 : i32
    return %c0_i32, %c0_i32_0 : i32, i32
  }
  func.func @transform_2(%arg0: i32) -> (i32, i32) {
    %c0_i32 = arith.constant 0 : i32
    %c0_i32_0 = arith.constant 0 : i32
    %c0_i32_1 = arith.constant 0 : i32
    return %c0_i32, %c0_i32_0 : i32, i32
  }
  func.func @transform_3(%arg0: i32) -> (i32, i32) {
    %c0_i32 = arith.constant 0 : i32
    %c0_i32_0 = arith.constant 0 : i32
    %c0_i32_1 = arith.constant 0 : i32
    return %c0_i32, %c0_i32_0 : i32, i32
  }
  func.func @transform_4(%arg0: i32) -> (i32, i32) {
    %c0_i32 = arith.constant 0 : i32
    %c0_i32_0 = arith.constant 0 : i32
    return %arg0, %c0_i32 : i32, i32
  }
}

</mosaic_0001>

<llo_original>
// kernel: time_embedding.1
$region0: #{time_embedding.1}
  #allocation0 [shape = 'u32[]', space=smem, size = 0x4, offset = 0x4, fixed_abs, tag = 'smem constant byte address 0x4 - core index']
  #allocation1 [shape = 'u32[144,128]{1,0:T(1,128)}', space=vmem, size = 0x12000, scoped, tag = 'internal scratch']
  %s0 = inlined_call_operand.vmem [shape: f32[8,1], index: 0, kind: input, shape index: {}]
  %s1 = inlined_call_operand.vmem [shape: f32[8,128], index: 1, kind: input, shape index: {}]
  %s2 = inlined_call_operand.vmem [shape: bf16[128,128], index: 2, kind: input, shape index: {}]
  %s3 = inlined_call_operand.vmem [shape: bf16[128,128], index: 3, kind: input, shape index: {}]
  %s4 = inlined_call_operand.hbm [shape: f32[8,128], index: 4, kind: output, shape index: {}]
  %s5 = sld [smem:[#allocation0]]
  $region26: #{time_embedding.1} parent=0
    _
  %s7 = ssub.s32 1, %s5
  %s8 = scalar_select 0, %s7, %s5
  $region1: #{time_embedding.1} parent=0
    #allocation2 [shape = 'u8[4096]{0}', space=vmem, size = 0x1000, scoped, tag = 'output window, operand 0, single buffered']
    #allocation3 [shape = 's32[1]{0}', space=sflag, size = 0x4, scoped, tag = 'scoped memory for time_embedding.1']
    %9 = vsyncpa [#allocation3], 0
    // Predicated region
    $region2: #{time_embedding.1} parent=1 // pred_check
      _
    $region3: #{time_embedding.1} parent=1 // pred_check_branch
      %11 = sbr.rel (0) target = $region5
    $region4: #{time_embedding.1} parent=1 // pred_region
      _
    $region5: #{time_embedding.1} parent=1 // pred_fallthru
      _
    // Predicated region
    $region6: #{time_embedding.1} parent=1 // pred_check
      _
    $region7: #{time_embedding.1} parent=1 // pred_check_branch
      %13 = sbr.rel (0) target = $region9
    $region8: #{time_embedding.1} parent=1 // pred_region
      _
    $region9: #{time_embedding.1} parent=1 // pred_fallthru
      _
    // Predicated region
    $region10: #{time_embedding.1} parent=1 // pred_check
      _
    $region11: #{time_embedding.1} parent=1 // pred_check_branch
      %15 = sbr.rel (0) target = $region13
    $region12: #{time_embedding.1} parent=1 // pred_region
      _
    $region13: #{time_embedding.1} parent=1 // pred_fallthru
      _
    // Predicated region
    $region14: #{time_embedding.1} parent=1 // pred_check
      _
    $region15: #{time_embedding.1} parent=1 // pred_check_branch
      %17 = sbr.rel (0) target = $region17
    $region16: #{time_embedding.1} parent=1 // pred_region
      _
    $region17: #{time_embedding.1} parent=1 // pred_fallthru
      _
    %v19 = vld [vmem:[%s1] sm:$0x1]
    %v20 = vld [vmem:[%s1 + $0x1] sm:$0x1]
    %v21 = vld [vmem:[%s1 + $0x2] sm:$0x1]
    %v22 = vld [vmem:[%s1 + $0x3] sm:$0x1]
    %v23 = vld [vmem:[%s0] sm:$0xff]
    %25 = vset.pattern.permute.xlu0 0
    %26 = vperm.xlu0 %25, %v23
    %v27 = vpop.permute.xlu0 %26
    %v29 = vlaneseq
    %v30 = vshrl.u32 %v29, 7
    %v31 = vsub.s32 0, %v30
    %v32 = vrot.slane %v19, %v31
    %v33 = vmul.f32 %v27, %v32
    %v34 = vlaneseq
    %v35 = vshrl.u32 %v34, 7
    %v36 = vsub.s32 0, %v35
    %v37 = vrot.slane %v20, %v36
    %v38 = vadd.f32 %v33, %v37
    %v39 = vand.u32 2147483647, %v38
    %vm40 = vcmp.le.f32.partialorder %v39, 0.7853982
    %vm41 = vcmp.lt.s32.totalorder %v38, 0
    %v42 = vand.u32 %v38, 2139095040
    %v43 = vshrl.u32 %v42, 23
    %v44 = vsub.s32 %v43, 127
    %v45 = vand.u32 2147483647, %v38
    %v46 = vand.u32 %v45, 8388607
    %v47 = vor.u32 %v46, 8388608
    %v48 = vsub.s32 0, %v47
    %v49 = vadd.s32 %v44, 1
    %vm50 = vcmp.gt.s32.totalorder %v49, 0
    %v51 = vsel %vm50, %v49, 0
    %v52 = vshrl.u32 %v51, 5
    %v53 = vand.u32 %v51, 31
    %v54 = vsub.s32 32, %v53
    %v55 = vshrl.u32 683565275, %v54
    %v56 = vshll.u32 683565275, %v53
    %v57 = vshrl.u32 2475754826, %v54
    %v58 = vor.u32 %v56, %v57
    %v59 = vshll.u32 2475754826, %v53
    %v60 = vshrl.u32 2131351028, %v54
    %v61 = vor.u32 %v59, %v60
    %v62 = vshll.u32 2131351028, %v53
    %v63 = vshrl.u32 2102212464, %v54
    %v64 = vor.u32 %v62, %v63
    %v65 = vshll.u32 2102212464, %v53
    %v66 = vshrl.u32 920167782, %v54
    %v67 = vor.u32 %v65, %v66
    %v68 = vshll.u32 920167782, %v53
    %v69 = vshrl.u32 1326507024, %v54
    %v70 = vor.u32 %v68, %v69
    %vm71 = vcmp.lt.s32.totalorder %v52, 1
    %vm72 = vcmp.lt.s32.totalorder %v52, 2
    %vm73 = vcmp.lt.s32.totalorder %v52, 3
    %vm74 = vcmp.lt.s32.totalorder %v52, 4
    %v75 = vsel %vm71, %v55, %v58
    %v76 = vsel %vm74, %v64, 2102212464
    %v77 = vsel %vm73, %v61, %v76
    %v78 = vsel %vm72, %v75, %v77
    %v79 = vsel %vm71, %v58, %v61
    %v80 = vsel %vm74, %v67, 920167782
    %v81 = vsel %vm73, %v64, %v80
    %v82 = vsel %vm72, %v79, %v81
    %v83 = vsel %vm71, %v61, %v64
    %v84 = vsel %vm74, %v70, 1326507024
    %v85 = vsel %vm73, %v67, %v84
    %v86 = vsel %vm72, %v83, %v85
    %v87 = vshll.u32 %v47, 8
    %v88 = vmul.u32.u64.compose %v87, %v86
    %v89 = vextract.low.u32 %v88
    %v90 = vextract.high.u32 %v88
    %v91 = vmul.u32.u64.compose %v87, %v82
    %v92 = vextract.low.u32 %v91
    %v93 = vextract.high.u32 %v91
    %v94 = vmul.u32 %v87, %v78
    %v95 = vadd.s32 %v90, %v92
    %vm96 = vc.u32 %v90, %v92
    %v97 = vadd.s32 %v93, 1
    %v98 = vsel %vm96, %v97, %v93
    %v99 = vadd.s32 %v94, %v98
    %v100 = vadd.s32 %v99, 536870912
    %v101 = vshrl.u32 %v100, 30
    %v102 = vshll.u32 %v101, 30
    %v103 = vsub.s32 %v99, %v102
    %vm104 = vcmp.lt.s32.totalorder %v103, 0
    %v105 = vsub.s32 0, %v103
    %v106 = vsel %vm104, %v105, %v103
    %v107 = vclz %v106
    %v108 = vsub.s32 %v107, 2
    %vm109 = vcmp.gt.s32.totalorder 0, %v108
    %v110 = vsel %vm109, 0, %v108
    %v111 = vsub.s32 32, %v110
    %v112 = vshll.u32 %v103, %v110
    %v113 = vshrl.u32 %v95, %v111
    %v114 = vor.u32 %v112, %v113
    %v115 = vsub.s32 4294967266, %v110
    %v116 = vadd.s32 %v115, 127
    %v117 = vshll.u32 %v116, 23
    %v118 = vor.u32 4788187, %v117
    %v119 = vand.u32 2147483647, %v118
    %v121 = vcvt.s32.f32 %v114
    %v122 = vmul.f32 %v121, %v119
    %v123 = vxor.u32 %v122, 2147483648
    %v124 = vsel %vm41, %v123, %v122
    %v125 = vsub.s32 4, %v101
    %v126 = vsel %vm41, %v125, %v101
    %v127 = vsel %vm40, %v38, %v124
    %v128 = vsel %vm40, 0, %v126
    %v129 = vcosq.f32.pop %v127
    %v130 = vsinq.f32.pop %v127
    %vm131 = vweird.f32 %v38
    %v132 = vadd.s32 %v128, 3
    %v133 = vand.u32 %v132, 3
    %vm134 = vcmp.lt.s32.totalorder %v133, 2
    %vm135 = vcmp.eq.s32.totalorder %v133, 0
    %v136 = vxor.u32 %v130, 2147483648
    %v137 = vsel %vm135, %v129, %v136
    %vm138 = vcmp.eq.s32.totalorder %v133, 2
    %v139 = vxor.u32 %v129, 2147483648
    %v140 = vsel %vm138, %v139, %v130
    %v141 = vsel %vm134, %v137, %v140
    %v142 = vsel %vm131, nan, %v141
    %v143 = vpack.c.bf16 %v142, %v142
    %v144 = vld [vmem:[%s2] sm:$0xf]
    %v145 = vld [vmem:[%s2 + $0x4] sm:$0xf]
    %v146 = vld [vmem:[%s2 + $0x8] sm:$0xf]
    %v147 = vld [vmem:[%s2 + $0xc] sm:$0xf]
    %v148 = vld [vmem:[%s2 + $0x10] sm:$0xf]
    %v149 = vld [vmem:[%s2 + $0x14] sm:$0xf]
    %v150 = vld [vmem:[%s2 + $0x18] sm:$0xf]
    %v151 = vld [vmem:[%s2 + $0x1c] sm:$0xf]
    %v152 = vld [vmem:[%s2 + $0x20] sm:$0xf]
    %v153 = vld [vmem:[%s2 + $0x24] sm:$0xf]
    %v154 = vld [vmem:[%s2 + $0x28] sm:$0xf]
    %v155 = vld [vmem:[%s2 + $0x2c] sm:$0xf]
    %v156 = vld [vmem:[%s2 + $0x30] sm:$0xf]
    %v157 = vld [vmem:[%s2 + $0x34] sm:$0xf]
    %v158 = vld [vmem:[%s2 + $0x38] sm:$0xf]
    %v159 = vld [vmem:[%s2 + $0x3c] sm:$0xf]
    %v160 = vlaneseq
    %v161 = vshrl.u32 %v160, 7
    %v162 = vsub.s32 0, %v161
    %v163 = vrot.slane %v21, %v162
    %v180 = vunpack.c.l.b16 %v144
    %v181 = vunpack.c.l.b16 %v145
    %v182 = vunpack.c.l.b16 %v146
    %v183 = vunpack.c.l.b16 %v147
    %v184 = vunpack.c.l.b16 %v148
    %v185 = vunpack.c.l.b16 %v149
    %v186 = vunpack.c.l.b16 %v150
    %v187 = vunpack.c.l.b16 %v151
    %v188 = vunpack.c.l.b16 %v152
    %v189 = vunpack.c.l.b16 %v153
    %v190 = vunpack.c.l.b16 %v154
    %v191 = vunpack.c.l.b16 %v155
    %v192 = vunpack.c.l.b16 %v156
    %v193 = vunpack.c.l.b16 %v157
    %v194 = vunpack.c.l.b16 %v158
    %v195 = vunpack.c.l.b16 %v159
    %v196 = vpack.c.b16 %v181, %v180
    %v197 = vpack.c.b16 %v183, %v182
    %v198 = vpack.c.b16 %v185, %v184
    %v199 = vpack.c.b16 %v187, %v186
    %v200 = vpack.c.b16 %v189, %v188
    %v201 = vpack.c.b16 %v191, %v190
    %v202 = vpack.c.b16 %v193, %v192
    %v203 = vpack.c.b16 %v195, %v194
    %212 = vmatprep.subr.bf16.mxu0 0
    %213 = vmatpush1.bf16.msra.mxu0 %v203
    %214 = vmatprep.subr.bf16.mxu0 0
    %215 = vmatpush1.bf16.msra.mxu0 %v202
    %216 = vmatprep.subr.bf16.mxu0 0
    %217 = vmatpush1.bf16.msra.mxu0 %v201
    %218 = vmatprep.subr.bf16.mxu0 0
    %219 = vmatpush1.bf16.msra.mxu0 %v200
    %220 = vmatprep.subr.bf16.mxu0 0
    %221 = vmatpush1.bf16.msra.mxu0 %v199
    %222 = vmatprep.subr.bf16.mxu0 0
    %223 = vmatpush1.bf16.msra.mxu0 %v198
    %224 = vmatprep.subr.bf16.mxu0 0
    %225 = vmatpush1.bf16.msra.mxu0 %v197
    %226 = vmatprep.subr.bf16.mxu0 0
    %227 = vmatpush1.bf16.msra.mxu0 %v196
    %228 = vmatprep.subr.bf16.mxu0 0
    %229 = vmatpush2.bf16.msra.mxu0 0
    %230 = vmatprep.subr.bf16.mxu0 0
    %231 = vmatpush2.bf16.msra.mxu0 0
    %232 = vmatprep.subr.bf16.mxu0 0
    %233 = vmatpush2.bf16.msra.mxu0 0
    %234 = vmatprep.subr.bf16.mxu0 0
    %235 = vmatpush2.bf16.msra.mxu0 0
    %236 = vmatprep.subr.bf16.mxu0 0
    %237 = vmatpush2.bf16.msra.mxu0 0
    %238 = vmatprep.subr.bf16.mxu0 0
    %239 = vmatpush2.bf16.msra.mxu0 0
    %240 = vmatprep.subr.bf16.mxu0 0
    %241 = vmatpush2.bf16.msra.mxu0 0
    %242 = vmatprep.subr.bf16.mxu0 0
    %243 = vmatpush2.bf16.msra.mxu0 0
    %244 = vmatprep.mubr.bf16.mxu0 0
    %245 = vmatmul.mubr.bf16.gmra.mxu0 %v143
    %v246 = vpop.f32.mrf.mxu0
    %v247 = vadd.f32 %v163, %v246
    %v248 = vpop.f32.mrf.mxu0
    %v249 = vpop.f32.mrf.mxu0
    %v250 = vpop.f32.mrf.mxu0
    %251 = vdwg.mxu0
    %v252 = vmax.f32 %v247, 0.0
    %v253 = vpack.c.bf16 %v252, %v252
    %v254 = vld [vmem:[%s3] sm:$0xf]
    %v255 = vld [vmem:[%s3 + $0x4] sm:$0xf]
    %v256 = vld [vmem:[%s3 + $0x8] sm:$0xf]
    %v257 = vld [vmem:[%s3 + $0xc] sm:$0xf]
    %v258 = vld [vmem:[%s3 + $0x10] sm:$0xf]
    %v259 = vld [vmem:[%s3 + $0x14] sm:$0xf]
    %v260 = vld [vmem:[%s3 + $0x18] sm:$0xf]
    %v261 = vld [vmem:[%s3 + $0x1c] sm:$0xf]
    %v262 = vld [vmem:[%s3 + $0x20] sm:$0xf]
    %v263 = vld [vmem:[%s3 + $0x24] sm:$0xf]
    %v264 = vld [vmem:[%s3 + $0x28] sm:$0xf]
    %v265 = vld [vmem:[%s3 + $0x2c] sm:$0xf]
    %v266 = vld [vmem:[%s3 + $0x30] sm:$0xf]
    %v267 = vld [vmem:[%s3 + $0x34] sm:$0xf]
    %v268 = vld [vmem:[%s3 + $0x38] sm:$0xf]
    %v269 = vld [vmem:[%s3 + $0x3c] sm:$0xf]
    %v270 = vlaneseq
    %v271 = vshrl.u32 %v270, 7
    %v272 = vsub.s32 0, %v271
    %v273 = vrot.slane %v22, %v272
    %v290 = vunpack.c.l.b16 %v254
    %v291 = vunpack.c.l.b16 %v255
    %v292 = vunpack.c.l.b16 %v256
    %v293 = vunpack.c.l.b16 %v257
    %v294 = vunpack.c.l.b16 %v258
    %v295 = vunpack.c.l.b16 %v259
    %v296 = vunpack.c.l.b16 %v260
    %v297 = vunpack.c.l.b16 %v261
    %v298 = vunpack.c.l.b16 %v262
    %v299 = vunpack.c.l.b16 %v263
    %v300 = vunpack.c.l.b16 %v264
    %v301 = vunpack.c.l.b16 %v265
    %v302 = vunpack.c.l.b16 %v266
    %v303 = vunpack.c.l.b16 %v267
    %v304 = vunpack.c.l.b16 %v268
    %v305 = vunpack.c.l.b16 %v269
    %v306 = vpack.c.b16 %v291, %v290
    %v307 = vpack.c.b16 %v293, %v292
    %v308 = vpack.c.b16 %v295, %v294
    %v309 = vpack.c.b16 %v297, %v296
    %v310 = vpack.c.b16 %v299, %v298
    %v311 = vpack.c.b16 %v301, %v300
    %v312 = vpack.c.b16 %v303, %v302
    %v313 = vpack.c.b16 %v305, %v304
    %322 = vmatprep.subr.bf16.mxu0 0
    %323 = vmatpush1.bf16.msra.mxu0 %v313
    %324 = vmatprep.subr.bf16.mxu0 0
    %325 = vmatpush1.bf16.msra.mxu0 %v312
    %326 = vmatprep.subr.bf16.mxu0 0
    %327 = vmatpush1.bf16.msra.mxu0 %v311
    %328 = vmatprep.subr.bf16.mxu0 0
    %329 = vmatpush1.bf16.msra.mxu0 %v310
    %330 = vmatprep.subr.bf16.mxu0 0
    %331 = vmatpush1.bf16.msra.mxu0 %v309
    %332 = vmatprep.subr.bf16.mxu0 0
    %333 = vmatpush1.bf16.msra.mxu0 %v308
    %334 = vmatprep.subr.bf16.mxu0 0
    %335 = vmatpush1.bf16.msra.mxu0 %v307
    %336 = vmatprep.subr.bf16.mxu0 0
    %337 = vmatpush1.bf16.msra.mxu0 %v306
    %338 = vmatprep.subr.bf16.mxu0 0
    %339 = vmatpush2.bf16.msra.mxu0 0
    %340 = vmatprep.subr.bf16.mxu0 0
    %341 = vmatpush2.bf16.msra.mxu0 0
    %342 = vmatprep.subr.bf16.mxu0 0
    %343 = vmatpush2.bf16.msra.mxu0 0
    %344 = vmatprep.subr.bf16.mxu0 0
    %345 = vmatpush2.bf16.msra.mxu0 0
    %346 = vmatprep.subr.bf16.mxu0 0
    %347 = vmatpush2.bf16.msra.mxu0 0
    %348 = vmatprep.subr.bf16.mxu0 0
    %349 = vmatpush2.bf16.msra.mxu0 0
    %350 = vmatprep.subr.bf16.mxu0 0
    %351 = vmatpush2.bf16.msra.mxu0 0
    %352 = vmatprep.subr.bf16.mxu0 0
    %353 = vmatpush2.bf16.msra.mxu0 0
    %354 = vmatprep.mubr.bf16.mxu0 0
    %355 = vmatmul.mubr.bf16.gmra.mxu0 %v253
    %v356 = vpop.f32.mrf.mxu0
    %v357 = vadd.f32 %v273, %v356
    %v358 = vpop.f32.mrf.mxu0
    %v359 = vpop.f32.mrf.mxu0
    %v360 = vpop.f32.mrf.mxu0
    %361 = vdwg.mxu0
    %362 = vst [vmem:[#allocation2] sm:$0xff] %v357
    // Predicated region
    $region18: #{time_embedding.1} parent=1 // pred_check
      _
    $region19: #{time_embedding.1} parent=1 // pred_check_branch
      %364 = sbr.rel (0) target = $region21
    $region20: #{time_embedding.1} parent=1 // pred_region
      %s366 = ssub.s32 128, 128
      %367 = vsyncadd [#allocation3], %s366
      %s369 = sshll.u32 [#allocation2], 4
      %s370 = int_to_ptr.vmem [resolvable:$true] %s369
      %372 = dma.vmem_to_hbm [thread:$0]  %s370, 128, %s4, [#allocation3]
    $region21: #{time_embedding.1} parent=1 // pred_fallthru
      _
    // Predicated region
    $region22: #{time_embedding.1} parent=1 // pred_check
      _
    $region23: #{time_embedding.1} parent=1 // pred_check_branch
      %374 = sbr.rel (0) target = $region25
    $region24: #{time_embedding.1} parent=1 // pred_region
      %375 = dma.done [#allocation3], 128
    $region25: #{time_embedding.1} parent=1 // pred_fallthru
      _
    %376 = vsyncpa [#allocation3], 1

</llo_original>
